<compile_context>
chip_gen: v7x
topology: tpu7x:2x2x1
jax: 0.10.0
libtpu: 0.0.40
codegen_flags: <defaults>
</compile_context>

<pallas_src>
import functools

import jax
import jax.numpy as jnp
from jax import lax
from jax.experimental import pallas as pl
from jax.experimental.pallas import tpu as pltpu


def _round_up(x, m):
    return ((x + m - 1) // m) * m


def _vmem_capacity_bytes():
    """Physical VMEM per core; conservative (v7x-safe) fallback if unknown."""
    try:
        info = pltpu.get_tpu_info()
        cap = getattr(info, "vmem_capacity_bytes", None)
        if cap:
            return int(cap)
    except Exception:
        pass
    return 64 * 1024 * 1024


def _lane_fold_128(v):
    """Sum a (1, TP) f32 vector down to (1, 128) lane partials.

    TP is a multiple of 128, so each 128-lane chunk is one vreg; the tree of
    plain VPU adds exposes ILP and needs no loads/stores or cross-lane moves.
    """
    tp = v.shape[-1]
    chunks = [v[:, i * 128:(i + 1) * 128] for i in range(tp // 128)]
    while len(chunks) > 1:
        nxt = [chunks[j] + chunks[j + 1] for j in range(0, len(chunks) - 1, 2)]
        if len(chunks) % 2:
            nxt.append(chunks[-1])
        chunks = nxt
    return chunks[0]


def _focal_loss_kernel(labels_ref, logits_ref, sum_ref, cnt_ref,
                       *, gamma, ignore_lb, hw, tp):
    t = pl.program_id(1)

    # per-image partial accumulators live in the resident output blocks
    @pl.when(t == 0)
    def _():
        sum_ref[...] = jnp.zeros_like(sum_ref)
        cnt_ref[...] = jnp.zeros_like(cnt_ref)

    x = logits_ref[...].astype(jnp.float32)      # (C, TP) classes on sublanes
    labels = labels_ref[...]                     # (1, TP) int32, lane-dense

    # numerically stable log-softmax pieces over the class (sublane) axis
    m = jnp.max(x, axis=0, keepdims=True)                       # (1, TP)
    s = x - m                                                   # (C, TP)
    denom = jnp.sum(jnp.exp(s), axis=0, keepdims=True)          # (1, TP)

    # gather s[label, pixel] via one-hot over sublanes (no cross-lane gather on TPU)
    row = lax.broadcasted_iota(jnp.int32, x.shape, 0)           # (C, TP)
    onehot = row == labels                                      # (C, TP)
    s_label = jnp.sum(jnp.where(onehot, s, 0.0), axis=0, keepdims=True)  # (1, TP)

    # per-pixel log_softmax and softmax prob at the label class only
    logsm_label = s_label - jnp.log(denom)                      # (1, TP)
    p_label = jnp.exp(logsm_label)                              # (1, TP)
    one_minus_p = 1.0 - p_label

    # focal factor: specialize small integer gamma to plain multiplies (VPU),
    # fall back to pow (EUP exp+log) for non-integer gamma.
    g = float(gamma)
    if g == int(g) and 0 <= int(g) <= 8:
        gi = int(g)
        if gi == 0:
            factor = jnp.ones_like(one_minus_p)
        else:
            factor = one_minus_p
            for _ in range(gi - 1):
                factor = factor * one_minus_p
    else:
        factor = jnp.power(one_minus_p, g)

    loss = -(factor * logsm_label)                              # (1, TP)

    valid = labels != ignore_lb                                 # (1, TP)
    if hw % tp != 0:
        # ragged tail: pixels past HW carry undefined logits/labels -> mask them
        lane = lax.broadcasted_iota(jnp.int32, labels.shape, 1)
        valid = jnp.logical_and(valid, t * tp + lane < hw)

    loss = jnp.where(valid, loss, 0.0)
    vcnt = valid.astype(jnp.float32)

    # fold (1, TP) -> (1, 128) in registers; accumulate into the resident output
    sum_ref[...] += _lane_fold_128(loss)
    cnt_ref[...] += _lane_fold_128(vcnt)


def softmax_focal_loss(logits, labels, *, gamma, ignore_lb=256,
                       max_tile_pixels=65536):
    """logits: (N, C, H, W) float; labels: (N, H, W) int. Returns scalar loss."""
    N, C, H, W = logits.shape
    HW = H * W

    # NCHW is already the right order for classes-on-sublanes / pixels-on-lanes.
    logits3 = logits.reshape(N, C, HW)                    # keep producer dtype (e.g. bf16)
    labels3 = labels.reshape(N, 1, HW).astype(jnp.int32)

    logit_bytes = jnp.dtype(logits3.dtype).itemsize
    label_bytes = 4

    # VMEM-budget-derived pixel tile (double-buffered inputs), generation-aware.
    vmem_cap = _vmem_capacity_bytes()
    budget = int(vmem_cap * 0.6)                          # headroom for outputs/compiler scratch
    per_pixel = 2 * (C * logit_bytes + label_bytes)       # double-buffered bytes per pixel
    tp = budget // per_pixel
    tp = max(128, min(int(tp), int(max_tile_pixels)))
    tp = (tp // 128) * 128
    tp = min(tp, _round_up(HW, 128))
    assert tp % 128 == 0

    grid = (N, pl.cdiv(HW, tp))

    footprint = per_pixel * tp + 4 * 128 * 4 * 2          # input windows + tiny outputs
    vmem_limit = min(int(vmem_cap * 0.75),
                     max(footprint + (4 << 20), 16 << 20))

    kernel = functools.partial(_focal_loss_kernel, gamma=float(gamma),
                               ignore_lb=int(ignore_lb), hw=HW, tp=tp)

    sums, cnts = pl.pallas_call(
        kernel,
        out_shape=(jax.ShapeDtypeStruct((N, 1, 128), jnp.float32),
                   jax.ShapeDtypeStruct((N, 1, 128), jnp.float32)),
        grid_spec=pltpu.PrefetchScalarGridSpec(
            num_scalar_prefetch=0,
            grid=grid,
            in_specs=[
                # labels: (N, 1, HW) -> kernel sees (1, TP), lane-dense
                pl.BlockSpec((None, 1, tp), lambda n, t: (n, 0, t)),
                # logits: (N, C, HW) -> kernel sees (C, TP)
                pl.BlockSpec((None, C, tp), lambda n, t: (n, 0, t)),
            ],
            out_specs=[
                # per-image (1, 128) lane partials, resident across the t axis
                pl.BlockSpec((None, 1, 128), lambda n, t: (n, 0, 0)),
                pl.BlockSpec((None, 1, 128), lambda n, t: (n, 0, 0)),
            ],
        ),
        compiler_params=pltpu.CompilerParams(
            dimension_semantics=("parallel", "arbitrary"),
            vmem_limit_bytes=int(vmem_limit)),
    )(labels3, logits3)

    # Final tiny reduction + mean in the wrapper (NLLLoss(ignore_index, 'mean')).
    # All-ignored input yields 0/0 -> NaN, matching PyTorch.
    return jnp.sum(sums) / jnp.sum(cnts)


def _reference(logits, labels, gamma, ignore_lb=256):
    # pure-JAX reference matching the PyTorch module
    scores = jax.nn.softmax(logits, axis=1)
    factor = jnp.power(1.0 - scores, gamma)
    log_score = factor * jax.nn.log_softmax(logits, axis=1)   # (N, C, H, W)
    valid = labels != ignore_lb
    safe_labels = jnp.where(valid, labels, 0)
    gathered = jnp.take_along_axis(log_score, safe_labels[:, None, :, :], axis=1)[:, 0]
    loss_sum = jnp.sum(jnp.where(valid, -gathered, 0.0))
    return loss_sum / jnp.sum(valid)


if __name__ == "__main__":
    # module params (deterministic, in-script)
    gamma = 2.0
    ignore_lb = 256

    # small NCHW shapes consistent with a segmentation-style forward
    N, C, H, W = 2, 8, 16, 16
    key = jax.random.PRNGKey(0)
    k1, k2, k3 = jax.random.split(key, 3)

    logits = jax.random.normal(k1, (N, C, H, W), dtype=jnp.float32)
    labels = jax.random.randint(k2, (N, H, W), 0, C, dtype=jnp.int32)
    # sprinkle some ignore_index pixels to exercise masking
    ignore_mask = jax.random.uniform(k3, (N, H, W)) < 0.1
    labels = jnp.where(ignore_mask, jnp.int32(ignore_lb), labels)

    loss = softmax_focal_loss(logits, labels, gamma=gamma, ignore_lb=ignore_lb)
    loss = jax.block_until_ready(loss)

    ref = _reference(logits, labels, gamma, ignore_lb)
    assert jnp.allclose(loss, ref, rtol=1e-5, atol=1e-5), (loss, ref)

    print("KERNEL_OK")
</pallas_src>

<mosaic_0001>
module attributes {stable_mosaic.version = 11 : i64} {
  func.func @_focal_loss_kernel(%arg0: i32, %arg1: i32, %arg2: memref<1x1x256xi32, #tpu.memory_space<vmem>>, %arg3: memref<1x8x256xf32, #tpu.memory_space<vmem>>, %arg4: memref<1x1x128xf32, #tpu.memory_space<vmem>>, %arg5: memref<1x1x128xf32, #tpu.memory_space<vmem>>) attributes {dimension_semantics = [#tpu.dimension_semantics<parallel>, #tpu.dimension_semantics<arbitrary>], iteration_bounds = array<i64: 2, 1>, scalar_prefetch = 0 : i64, scratch_operands = 0 : i64, tpu.core_type = #tpu.core_type<tc>, window_params = [{transform_indices = @transform_0, window_bounds = array<i64: 1, 1, 256>}, {transform_indices = @transform_1, window_bounds = array<i64: 1, 8, 256>}, {transform_indices = @transform_2, window_bounds = array<i64: 1, 1, 128>}, {transform_indices = @transform_3, window_bounds = array<i64: 1, 1, 128>}]} {
    %c0_i32 = arith.constant 0 : i32
    %0 = arith.cmpi eq, %arg1, %c0_i32 : i32
    %1 = arith.extui %0 : i1 to i32
    %c0_i32_0 = arith.constant 0 : i32
    %2 = arith.cmpi ne, %1, %c0_i32_0 : i32
    scf.if %2 {
      %cst_24 = arith.constant 0.000000e+00 : f32
      %54 = vector.broadcast %cst_24 : f32 to vector<1x128xf32>
      %c0_25 = arith.constant 0 : index
      %c0_26 = arith.constant 0 : index
      %c0_27 = arith.constant 0 : index
      %55 = vector.load %arg4[%c0_25, %c0_26, %c0_27] : memref<1x1x128xf32, #tpu.memory_space<vmem>>, vector<1x1x128xf32>
      %56 = vector.shape_cast %55 : vector<1x1x128xf32> to vector<1x128xf32>
      %57 = vector.shape_cast %54 : vector<1x128xf32> to vector<1x1x128xf32>
      tpu.vector_store %arg4[%c0_25, %c0_26, %c0_27], %57 {strides = array<i32>} : memref<1x1x128xf32, #tpu.memory_space<vmem>>, vector<1x1x128xf32>,
      %cst_28 = arith.constant 0.000000e+00 : f32
      %58 = vector.broadcast %cst_28 : f32 to vector<1x128xf32>
      %c0_29 = arith.constant 0 : index
      %c0_30 = arith.constant 0 : index
      %c0_31 = arith.constant 0 : index
      %59 = vector.load %arg5[%c0_29, %c0_30, %c0_31] : memref<1x1x128xf32, #tpu.memory_space<vmem>>, vector<1x1x128xf32>
      %60 = vector.shape_cast %59 : vector<1x1x128xf32> to vector<1x128xf32>
      %61 = vector.shape_cast %58 : vector<1x128xf32> to vector<1x1x128xf32>
      tpu.vector_store %arg5[%c0_29, %c0_30, %c0_31], %61 {strides = array<i32>} : memref<1x1x128xf32, #tpu.memory_space<vmem>>, vector<1x1x128xf32>,
    } else {
    }
    %c0 = arith.constant 0 : index
    %c0_1 = arith.constant 0 : index
    %c0_2 = arith.constant 0 : index
    %3 = vector.load %arg3[%c0, %c0_1, %c0_2] : memref<1x8x256xf32, #tpu.memory_space<vmem>>, vector<1x8x256xf32>
    %4 = vector.shape_cast %3 : vector<1x8x256xf32> to vector<8x256xf32>
    %c0_3 = arith.constant 0 : index
    %c0_4 = arith.constant 0 : index
    %c0_5 = arith.constant 0 : index
    %5 = vector.load %arg2[%c0_3, %c0_4, %c0_5] : memref<1x1x256xi32, #tpu.memory_space<vmem>>, vector<1x1x256xi32>
    %6 = vector.shape_cast %5 : vector<1x1x256xi32> to vector<1x256xi32>
    %cst = arith.constant dense<0xFF800000> : vector<256xf32>
    %7 = vector.multi_reduction <maximumf>, %4, %cst [0] : vector<8x256xf32> to vector<256xf32>
    %8 = vector.shape_cast %7 : vector<256xf32> to vector<1x256xf32>
    %9 = vector.broadcast %8 : vector<1x256xf32> to vector<8x256xf32>
    %10 = arith.subf %4, %9 : vector<8x256xf32>
    %11 = math.exp %10 : vector<8x256xf32>
    %cst_6 = arith.constant dense<0.000000e+00> : vector<256xf32>
    %12 = vector.multi_reduction <add>, %11, %cst_6 [0] : vector<8x256xf32> to vector<256xf32>
    %13 = vector.shape_cast %12 : vector<256xf32> to vector<1x256xf32>
    %14 = tpu.iota {dimensions = array<i32: 0>} : vector<8x256xi32>
    %15 = vector.broadcast %6 : vector<1x256xi32> to vector<8x256xi32>
    %16 = arith.cmpi eq, %14, %15 : vector<8x256xi32>
    %cst_7 = arith.constant 0.000000e+00 : f32
    %17 = vector.broadcast %cst_7 : f32 to vector<8x256xf32>
    %18 = arith.select %16, %10, %17 : vector<8x256xi1>, vector<8x256xf32>
    %cst_8 = arith.constant dense<0.000000e+00> : vector<256xf32>
    %19 = vector.multi_reduction <add>, %18, %cst_8 [0] : vector<8x256xf32> to vector<256xf32>
    %20 = vector.shape_cast %19 : vector<256xf32> to vector<1x256xf32>
    %21 = math.log %13 : vector<1x256xf32>
    %22 = arith.subf %20, %21 : vector<1x256xf32>
    %23 = math.exp %22 : vector<1x256xf32>
    %cst_9 = arith.constant 1.000000e+00 : f32
    %24 = vector.broadcast %cst_9 : f32 to vector<1x256xf32>
    %25 = arith.subf %24, %23 : vector<1x256xf32>
    %26 = arith.mulf %25, %25 : vector<1x256xf32>
    %27 = arith.mulf %26, %22 : vector<1x256xf32>
    %cst_10 = arith.constant 0.000000e+00 : f32
    %28 = vector.broadcast %cst_10 : f32 to vector<1x256xf32>
    %29 = arith.subf %28, %27 : vector<1x256xf32>
    %c256_i32 = arith.constant 256 : i32
    %30 = vector.broadcast %c256_i32 : i32 to vector<1x256xi32>
    %31 = arith.cmpi ne, %6, %30 : vector<1x256xi32>
    %cst_11 = arith.constant 0.000000e+00 : f32
    %32 = vector.broadcast %cst_11 : f32 to vector<1x256xf32>
    %33 = arith.select %31, %29, %32 : vector<1x256xi1>, vector<1x256xf32>
    %34 = arith.extui %31 : vector<1x256xi1> to vector<1x256xi32>
    %35 = arith.sitofp %34 : vector<1x256xi32> to vector<1x256xf32>
    %c0_12 = arith.constant 0 : index
    %c0_13 = arith.constant 0 : index
    %c0_14 = arith.constant 0 : index
    %36 = vector.load %arg4[%c0_12, %c0_13, %c0_14] : memref<1x1x128xf32, #tpu.memory_space<vmem>>, vector<1x1x128xf32>
    %37 = vector.shape_cast %36 : vector<1x1x128xf32> to vector<1x128xf32>
    %38 = vector.extract_strided_slice %33 {offsets = [0, 0], sizes = [1, 128], strides = [1, 1]} : vector<1x256xf32> to vector<1x128xf32>
    %39 = vector.extract_strided_slice %33 {offsets = [0, 128], sizes = [1, 128], strides = [1, 1]} : vector<1x256xf32> to vector<1x128xf32>
    %40 = arith.addf %38, %39 : vector<1x128xf32>
    %41 = arith.addf %37, %40 : vector<1x128xf32>
    %c0_15 = arith.constant 0 : index
    %c0_16 = arith.constant 0 : index
    %c0_17 = arith.constant 0 : index
    %42 = vector.load %arg4[%c0_15, %c0_16, %c0_17] : memref<1x1x128xf32, #tpu.memory_space<vmem>>, vector<1x1x128xf32>
    %43 = vector.shape_cast %42 : vector<1x1x128xf32> to vector<1x128xf32>
    %44 = vector.shape_cast %41 : vector<1x128xf32> to vector<1x1x128xf32>
    tpu.vector_store %arg4[%c0_15, %c0_16, %c0_17], %44 {strides = array<i32>} : memref<1x1x128xf32, #tpu.memory_space<vmem>>, vector<1x1x128xf32>,
    %c0_18 = arith.constant 0 : index
    %c0_19 = arith.constant 0 : index
    %c0_20 = arith.constant 0 : index
    %45 = vector.load %arg5[%c0_18, %c0_19, %c0_20] : memref<1x1x128xf32, #tpu.memory_space<vmem>>, vector<1x1x128xf32>
    %46 = vector.shape_cast %45 : vector<1x1x128xf32> to vector<1x128xf32>
    %47 = vector.extract_strided_slice %35 {offsets = [0, 0], sizes = [1, 128], strides = [1, 1]} : vector<1x256xf32> to vector<1x128xf32>
    %48 = vector.extract_strided_slice %35 {offsets = [0, 128], sizes = [1, 128], strides = [1, 1]} : vector<1x256xf32> to vector<1x128xf32>
    %49 = arith.addf %47, %48 : vector<1x128xf32>
    %50 = arith.addf %46, %49 : vector<1x128xf32>
    %c0_21 = arith.constant 0 : index
    %c0_22 = arith.constant 0 : index
    %c0_23 = arith.constant 0 : index
    %51 = vector.load %arg5[%c0_21, %c0_22, %c0_23] : memref<1x1x128xf32, #tpu.memory_space<vmem>>, vector<1x1x128xf32>
    %52 = vector.shape_cast %51 : vector<1x1x128xf32> to vector<1x128xf32>
    %53 = vector.shape_cast %50 : vector<1x128xf32> to vector<1x1x128xf32>
    tpu.vector_store %arg5[%c0_21, %c0_22, %c0_23], %53 {strides = array<i32>} : memref<1x1x128xf32, #tpu.memory_space<vmem>>, vector<1x1x128xf32>,
    return
  }
  func.func @transform_0(%arg0: i32, %arg1: i32) -> (i32, i32, i32) {
    %c0_i32 = arith.constant 0 : i32
    %c0_i32_0 = arith.constant 0 : i32
    return %arg0, %c0_i32, %arg1 : i32, i32, i32
  }
  func.func @transform_1(%arg0: i32, %arg1: i32) -> (i32, i32, i32) {
    %c0_i32 = arith.constant 0 : i32
    %c0_i32_0 = arith.constant 0 : i32
    return %arg0, %c0_i32, %arg1 : i32, i32, i32
  }
  func.func @transform_2(%arg0: i32, %arg1: i32) -> (i32, i32, i32) {
    %c0_i32 = arith.constant 0 : i32
    %c0_i32_0 = arith.constant 0 : i32
    %c0_i32_1 = arith.constant 0 : i32
    return %arg0, %c0_i32, %c0_i32_0 : i32, i32, i32
  }
  func.func @transform_3(%arg0: i32, %arg1: i32) -> (i32, i32, i32) {
    %c0_i32 = arith.constant 0 : i32
    %c0_i32_0 = arith.constant 0 : i32
    %c0_i32_1 = arith.constant 0 : i32
    return %arg0, %c0_i32, %c0_i32_0 : i32, i32, i32
  }
}

</mosaic_0001>

<llo_original>
// kernel: tpu_custom_call.1
$region0: #{tpu_custom_call.1}
  #allocation0 [shape = 'u32[]', space=smem, size = 0x4, offset = 0x4, fixed_abs, tag = 'smem constant byte address 0x4 - core index']
  #allocation1 [shape = 'u32[144,128]{1,0:T(1,128)}', space=vmem, size = 0x12000, scoped, tag = 'internal scratch']
  %s0 = inlined_call_operand.hbm [shape: s32[2,1,256], index: 0, kind: input, shape index: {}]
  %s1 = inlined_call_operand.hbm [shape: f32[2,8,256], index: 1, kind: input, shape index: {}]
  %s2 = inlined_call_operand.hbm [shape: f32[2,1,128], index: 2, kind: output, shape index: {0}]
  %s3 = inlined_call_operand.hbm [shape: f32[2,1,128], index: 3, kind: output, shape index: {1}]
  %4 = xla_tuple %s2, %s3
  %s5 = sld [smem:[#allocation0]]
  $region61: #{tpu_custom_call.1} parent=0
    _
  %s7 = ssub.s32 1, %s5
  %s8 = scalar_select 0, %s7, %s5
  $region1: #{tpu_custom_call.1} parent=0
    #allocation2 [shape = 'u8[2048]{0}', space=vmem, size = 0x800, scoped, tag = 'input window, operand 0']
    #allocation3 [shape = 's32[2]{0}', space=sflag, size = 0x8, scoped, tag = 'scoped memory for tpu_custom_call.1']
    #allocation4 [shape = 's32[2]{0}', space=sflag, size = 0x8, scoped, tag = 'scoped memory for tpu_custom_call.1']
    #allocation5 [shape = 'u8[16384]{0}', space=vmem, size = 0x4000, scoped, tag = 'input window, operand 1']
    #allocation6 [shape = 's32[2]{0}', space=sflag, size = 0x8, scoped, tag = 'scoped memory for tpu_custom_call.1']
    #allocation7 [shape = 'u8[1024]{0}', space=vmem, size = 0x400, scoped, tag = 'output window, operand 0']
    #allocation8 [shape = 'u8[1024]{0}', space=vmem, size = 0x400, scoped, tag = 'output window, operand 1']
    #allocation9 [shape = 's32[2]{0}', space=sflag, size = 0x8, scoped, tag = 'scoped memory for tpu_custom_call.1']
    %9 = vsyncpa [#allocation3], 0
    %s10 = scalar_lea.sflag [#allocation3], 1
    %11 = vsyncpa %s10, 0
    %12 = vsyncpa [#allocation6], 0
    %s13 = scalar_lea.sflag [#allocation6], 1
    %14 = vsyncpa %s13, 0
    %15 = vsyncpa [#allocation4], 0
    %s16 = scalar_lea.sflag [#allocation4], 1
    %17 = vsyncpa %s16, 0
    %18 = vsyncpa [#allocation9], 0
    %s19 = scalar_lea.sflag [#allocation9], 1
    %20 = vsyncpa %s19, 0
    loop: start=0, step=1, limit=4
    $region2: #{tpu_custom_call.1} parent=1 // loop_pre_header
      _
    $region3: #{tpu_custom_call.1} parent=1 // loop_header
      %s22 = sphi 0, %s26
      %p23 = scmp.ge.s32.totalorder %s22, 4
      %s29 = sphi 0, %s41
      %s30 = sphi 0, %s37
      %s31 = sphi 0, %s29
      %s32 = sphi 0, %s30
      %s33 = sphi 0, %s31
      %s34 = sphi 0, %s32
      %s46 = sphi 0, %s48
      %s49 = sphi 0, %s46
      %s50 = sphi 0, %s49
      %s66 = sphi 0, %s50
      %s74 = sphi 0, %s76
      %s77 = sphi 0, %s74
      %s78 = sphi 0, %s77
      %s94 = sphi 0, %s78
      %s100 = sphi 0, %s102
      %s103 = sphi 0, %s100
      %s104 = sphi 0, %s103
      %s120 = sphi 0, %s104
      %s126 = sphi 0, %s128
      %s129 = sphi 0, %s126
      %s130 = sphi 0, %s129
      %s146 = sphi 0, %s130
    $region4: #{tpu_custom_call.1} parent=1 // loop_header_branch
      %25 = sbr.rel (%p23) target = $region8
    $region5: #{tpu_custom_call.1} parent=1 // loop_body
      %s27 = ssub.s32 %s22, 1
      %s28 = ssub.s32 %s22, 2
      %s35 = sadd.s32 1, %s30
      %p36 = scmp.ge.s32.totalorder %s35, 1
      %s37 = scalar_select %p36, 0, %s35
      %s38 = sadd.s32 1, %s29
      %s39 = scalar_select %p36, %s38, %s29
      %p40 = scmp.ge.s32.totalorder %s39, 2
      %s41 = scalar_select %p40, 0, %s39
      %s42 = ssub.s32 %s29, %s41
      %s43 = ssub.s32 %s30, %s37
      %s44 = sor.u32 %s42, %s43
      %p45 = scmp.eq.s32.totalorder %s44, 0
      %s47 = sadd.s32 %s46, 1
      %s48 = scalar_select %p45, %s46, %s47
      %p51 = pneg %p45
      %p52 = scmp.eq.s32.totalorder %s22, 1
      %p53 = por %p51, %p52
      %p54 = scmp.ne.s32.totalorder %s46, %s49
      %p55 = scmp.eq.s32.totalorder %s22, 0
      %p56 = por %p54, %p55
      %p57 = scmp.ne.s32.totalorder %s46, %s49
      %p58 = scmp.eq.s32.totalorder %s27, 1
      %p59 = por %p57, %p58
      %p60 = scmp.ne.s32.totalorder %s49, %s50
      %p61 = scmp.eq.s32.totalorder %s27, 0
      %p62 = por %p60, %p61
      %p63 = scmp.ne.s32.totalorder %s49, %s50
      %p64 = scmp.eq.s32.totalorder %s28, 1
      %p65 = por %p63, %p64
      %p67 = scmp.ne.s32.totalorder %s50, %s66
      %p68 = scmp.eq.s32.totalorder %s28, 0
      %p69 = por %p67, %p68
      %s70 = ssub.s32 %s29, %s41
      %s71 = ssub.s32 %s30, %s37
      %s72 = sor.u32 %s70, %s71
      %p73 = scmp.eq.s32.totalorder %s72, 0
      %s75 = sadd.s32 %s74, 1
      %s76 = scalar_select %p73, %s74, %s75
      %p79 = pneg %p73
      %p80 = scmp.eq.s32.totalorder %s22, 1
      %p81 = por %p79, %p80
      %p82 = scmp.ne.s32.totalorder %s74, %s77
      %p83 = scmp.eq.s32.totalorder %s22, 0
      %p84 = por %p82, %p83
      %p85 = scmp.ne.s32.totalorder %s74, %s77
      %p86 = scmp.eq.s32.totalorder %s27, 1
      %p87 = por %p85, %p86
      %p88 = scmp.ne.s32.totalorder %s77, %s78
      %p89 = scmp.eq.s32.totalorder %s27, 0
      %p90 = por %p88, %p89
      %p91 = scmp.ne.s32.totalorder %s77, %s78
      %p92 = scmp.eq.s32.totalorder %s28, 1
      %p93 = por %p91, %p92
      %p95 = scmp.ne.s32.totalorder %s78, %s94
      %p96 = scmp.eq.s32.totalorder %s28, 0
      %p97 = por %p95, %p96
      %s98 = ssub.s32 %s29, %s41
      %p99 = scmp.eq.s32.totalorder %s98, 0
      %s101 = sadd.s32 %s100, 1
      %s102 = scalar_select %p99, %s100, %s101
      %p105 = pneg %p99
      %p106 = scmp.eq.s32.totalorder %s22, 1
      %p107 = por %p105, %p106
      %p108 = scmp.ne.s32.totalorder %s100, %s103
      %p109 = scmp.eq.s32.totalorder %s22, 0
      %p110 = por %p108, %p109
      %p111 = scmp.ne.s32.totalorder %s100, %s103
      %p112 = scmp.eq.s32.totalorder %s27, 1
      %p113 = por %p111, %p112
      %p114 = scmp.ne.s32.totalorder %s103, %s104
      %p115 = scmp.eq.s32.totalorder %s27, 0
      %p116 = por %p114, %p115
      %p117 = scmp.ne.s32.totalorder %s103, %s104
      %p118 = scmp.eq.s32.totalorder %s28, 1
      %p119 = por %p117, %p118
      %p121 = scmp.ne.s32.totalorder %s104, %s120
      %p122 = scmp.eq.s32.totalorder %s28, 0
      %p123 = por %p121, %p122
      %s124 = ssub.s32 %s29, %s41
      %p125 = scmp.eq.s32.totalorder %s124, 0
      %s127 = sadd.s32 %s126, 1
      %s128 = scalar_select %p125, %s126, %s127
      %p131 = pneg %p125
      %p132 = scmp.eq.s32.totalorder %s22, 1
      %p133 = por %p131, %p132
      %p134 = scmp.ne.s32.totalorder %s126, %s129
      %p135 = scmp.eq.s32.totalorder %s22, 0
      %p136 = por %p134, %p135
      %p137 = scmp.ne.s32.totalorder %s126, %s129
      %p138 = scmp.eq.s32.totalorder %s27, 1
      %p139 = por %p137, %p138
      %p140 = scmp.ne.s32.totalorder %s129, %s130
      %p141 = scmp.eq.s32.totalorder %s27, 0
      %p142 = por %p140, %p141
      %p143 = scmp.ne.s32.totalorder %s129, %s130
      %p144 = scmp.eq.s32.totalorder %s28, 1
      %p145 = por %p143, %p144
      %p147 = scmp.ne.s32.totalorder %s130, %s146
      %p148 = scmp.eq.s32.totalorder %s28, 0
      %p149 = por %p147, %p148
      %p150 = scmp.le.s32.totalorder 1, %s22
      %p151 = scmp.lt.s32.totalorder %s22, 3
      %p152 = pnand %p150, %p151
      %p153 = pneg %p152
      // Predicated region
      $region9: #{tpu_custom_call.1} parent=5 // pred_check
        _
      $region10: #{tpu_custom_call.1} parent=5 // pred_check_branch
        %155 = sbr.rel (%p152) target = $region12
      $region11: #{tpu_custom_call.1} parent=5 // pred_region
        %s156 = ssub.s32 %s22, 1
      $region12: #{tpu_custom_call.1} parent=5 // pred_fallthru
        _
      %p157 = scmp.lt.s32.totalorder %s22, 2
      // Predicated region
      $region13: #{tpu_custom_call.1} parent=5 // pred_check
        %p158 = pneg %p157
      $region14: #{tpu_custom_call.1} parent=5 // pred_check_branch
        %160 = sbr.rel (%p158) target = $region16
      $region15: #{tpu_custom_call.1} parent=5 // pred_region
        // Predicated region
        $region17: #{tpu_custom_call.1} parent=15 // pred_check
          %p161 = pneg %p56
        $region18: #{tpu_custom_call.1} parent=15 // pred_check_branch
          %163 = sbr.rel (%p161) target = $region20
        $region19: #{tpu_custom_call.1} parent=15 // pred_region
          %s164 = sand.u32 %s46, 1
          %s165 = scalar_lea.sflag [#allocation3], %s164
          %s166 = sand.u32 %s46, 1
          %s167 = smul.addr %s166, 2
          %s168 = scalar_lea.vmem [#allocation2], %s167
          %s169 = smul.u32 2, %s30
          %s171 = ssub.s32 32, 32
          %172 = vsyncadd %s165, %s171
          %s173 = smul.addr %s29, 2
          %s174 = sadd.s32 %s169, %s173
          %s175 = smul.addr %s174, 16
          %s176 = scalar_lea.hbm %s0, %s175
          %s178 = sshll.u32 %s168, 4
          %s179 = int_to_ptr.vmem [resolvable:$true] %s178
          %181 = dma.hbm_to_vmem [thread:$0]  %s176, 32, %s179, %s165
        $region20: #{tpu_custom_call.1} parent=15 // pred_fallthru
          _
        // Predicated region
        $region21: #{tpu_custom_call.1} parent=15 // pred_check
          %p182 = pneg %p84
        $region22: #{tpu_custom_call.1} parent=15 // pred_check_branch
          %184 = sbr.rel (%p182) target = $region24
        $region23: #{tpu_custom_call.1} parent=15 // pred_region
          %s185 = sand.u32 %s74, 1
          %s186 = scalar_lea.sflag [#allocation6], %s185
          %s187 = sand.u32 %s74, 1
          %s188 = smul.addr %s187, 16
          %s189 = scalar_lea.vmem [#allocation5], %s188
          %s190 = smul.u32 2, %s30
          %s192 = ssub.s32 256, 256
          %193 = vsyncadd %s186, %s192
          %s194 = smul.addr %s29, 2
          %s195 = sadd.s32 %s190, %s194
          %s196 = smul.addr %s195, 128
          %s197 = scalar_lea.hbm %s1, %s196
          %s199 = sshll.u32 %s189, 4
          %s200 = int_to_ptr.vmem [resolvable:$true] %s199
          %202 = dma.hbm_to_vmem [thread:$0]  %s197, 256, %s200, %s186
        $region24: #{tpu_custom_call.1} parent=15 // pred_fallthru
          _
      $region16: #{tpu_custom_call.1} parent=5 // pred_fallthru
        _
      %p203 = scmp.le.s32.totalorder 1, %s22
      %p204 = scmp.lt.s32.totalorder %s22, 3
      %p205 = pnand %p203, %p204
      %p206 = pneg %p205
      // Predicated region
      $region25: #{tpu_custom_call.1} parent=5 // pred_check
        _
      $region26: #{tpu_custom_call.1} parent=5 // pred_check_branch
        %208 = sbr.rel (%p205) target = $region28
      $region27: #{tpu_custom_call.1} parent=5 // pred_region
        %s209 = ssub.s32 %s22, 1
        %s210 = sand.u32 %s49, 1
        %s211 = scalar_lea.sflag [#allocation3], %s210
        %s212 = sand.u32 %s49, 1
        %s213 = smul.addr %s212, 2
        %s214 = scalar_lea.vmem [#allocation2], %s213
        // Predicated region
        $region29: #{tpu_custom_call.1} parent=27 // pred_check
          %p215 = pneg %p62
        $region30: #{tpu_custom_call.1} parent=27 // pred_check_branch
          %217 = sbr.rel (%p215) target = $region32
        $region31: #{tpu_custom_call.1} parent=27 // pred_region
          %218 = dma.done %s211, 32
        $region32: #{tpu_custom_call.1} parent=27 // pred_fallthru
          _
        %s219 = sand.u32 %s77, 1
        %s220 = scalar_lea.sflag [#allocation6], %s219
        %s221 = sand.u32 %s77, 1
        %s222 = smul.addr %s221, 16
        %s223 = scalar_lea.vmem [#allocation5], %s222
        // Predicated region
        $region33: #{tpu_custom_call.1} parent=27 // pred_check
          %p224 = pneg %p90
        $region34: #{tpu_custom_call.1} parent=27 // pred_check_branch
          %226 = sbr.rel (%p224) target = $region36
        $region35: #{tpu_custom_call.1} parent=27 // pred_region
          %227 = dma.done %s220, 256
        $region36: #{tpu_custom_call.1} parent=27 // pred_fallthru
          _
        %s228 = sand.u32 %s49, 1
        %s229 = scalar_lea.sflag [#allocation3], %s228
        %s230 = sand.u32 %s49, 1
        %s231 = smul.addr %s230, 2
        %s232 = scalar_lea.vmem [#allocation2], %s231
        %p233 = pneg %p62
        %p234 = pneg %p59
        %s235 = sand.u32 %s77, 1
        %s236 = scalar_lea.sflag [#allocation6], %s235
        %s237 = sand.u32 %s77, 1
        %s238 = smul.addr %s237, 16
        %s239 = scalar_lea.vmem [#allocation5], %s238
        %p240 = pneg %p90
        %p241 = pneg %p87
        %p242 = pneg %p116
        %p243 = pneg %p113
        %s244 = sand.u32 %s103, 1
        %s245 = scalar_lea.sflag [#allocation4], %s244
        %s246 = sand.u32 %s103, 1
        %s247 = scalar_lea.vmem [#allocation7], %s246
        %p248 = pneg %p142
        %p249 = pneg %p139
        %s250 = sand.u32 %s129, 1
        %s251 = scalar_lea.sflag [#allocation9], %s250
        %s252 = sand.u32 %s129, 1
        %s253 = scalar_lea.vmem [#allocation8], %s252
        %s254 = smul.u32 2, %s32
        %s255 = smul.u32 2, %s32
        %p256 = scmp.eq.s32.totalorder %s32, 0
        // Predicated region
        $region37: #{tpu_custom_call.1} parent=27 // pred_check
          %p257 = pneg %p256
        $region38: #{tpu_custom_call.1} parent=27 // pred_check_branch
          %259 = sbr.rel (%p257) target = $region40
        $region39: #{tpu_custom_call.1} parent=27 // pred_region
          %260 = vst [vmem:[%s247] sm:$0x1] 0.0
          %261 = vst [vmem:[%s253] sm:$0x1] 0.0
        $region40: #{tpu_custom_call.1} parent=27 // pred_fallthru
          _
        %v262 = vld [vmem:[%s223] sm:$0xff]
        %v263 = vld [vmem:[%s223 + $0x8] sm:$0xff]
        %v264 = vld [vmem:[%s214] sm:$0x3]
        %v265 = vrot.slane %v262, 4
        %v266 = vmax.f32 %v262, %v265
        %v267 = vrot.slane %v266, 2
        %v268 = vmax.f32 %v266, %v267
        %v269 = vrot.slane %v268, 1
        %v270 = vmax.f32 %v268, %v269
        %v271 = vrot.slane %v263, 4
        %v272 = vmax.f32 %v263, %v271
        %v273 = vrot.slane %v272, 2
        %v274 = vmax.f32 %v272, %v273
        %v275 = vrot.slane %v274, 1
        %v276 = vmax.f32 %v274, %v275
        %v277 = vsub.f32 %v262, %v270
        %v278 = vsub.f32 %v263, %v276
        %v279 = vmul.f32 %v277, 1.442695
        %v280 = vpow.pop %v279
        %v281 = vmul.f32 %v278, 1.442695
        %v282 = vpow.pop %v281
        %v283 = vrot.slane %v280, 4
        %v284 = vadd.f32 %v280, %v283
        %v285 = vrot.slane %v284, 2
        %v286 = vadd.f32 %v284, %v285
        %v287 = vrot.slane %v286, 1
        %v288 = vadd.f32 %v286, %v287
        %v289 = vrot.slane %v282, 4
        %v290 = vadd.f32 %v282, %v289
        %v291 = vrot.slane %v290, 2
        %v292 = vadd.f32 %v290, %v291
        %v293 = vrot.slane %v292, 1
        %v294 = vadd.f32 %v292, %v293
        %v295 = vlaneseq
        %v296 = vshrl.u32 %v295, 7
        %v297 = vlaneseq
        %v298 = vshrl.u32 %v297, 7
        %v299 = vsub.s32 0, %v298
        %v300 = vrot.slane %v264, %v299
        %v301 = vlaneseq
        %v302 = vshrl.u32 %v301, 7
        %v303 = vsub.s32 1, %v302
        %v304 = vrot.slane %v264, %v303
        %vm305 = vcmp.eq.s32.totalorder %v296, %v300
        %vm306 = vcmp.eq.s32.totalorder %v296, %v304
        %v307 = vsel %vm305, %v277, 0.0
        %v308 = vsel %vm306, %v278, 0.0
        %v309 = vrot.slane %v307, 4
        %v310 = vadd.f32 %v307, %v309
        %v311 = vrot.slane %v310, 2
        %v312 = vadd.f32 %v310, %v311
        %v313 = vrot.slane %v312, 1
        %v314 = vadd.f32 %v312, %v313
        %v315 = vrot.slane %v308, 4
        %v316 = vadd.f32 %v308, %v315
        %v317 = vrot.slane %v316, 2
        %v318 = vadd.f32 %v316, %v317
        %v319 = vrot.slane %v318, 1
        %v320 = vadd.f32 %v318, %v319
        %v321 = vlog2.pop %v288
        %v322 = vmul.f32 %v321, 0.6931472
        %v323 = vlog2.pop %v294
        %v324 = vmul.f32 %v323, 0.6931472
        %v325 = vsub.f32 %v314, %v322
        %v326 = vsub.f32 %v320, %v324
        %v327 = vmul.f32 %v325, 1.442695
        %v328 = vpow.pop %v327
        %v329 = vmul.f32 %v326, 1.442695
        %v330 = vpow.pop %v329
        %v331 = vsub.f32 1.0, %v328
        %v332 = vsub.f32 1.0, %v330
        %v333 = vmul.f32 %v331, %v331
        %v334 = vmul.f32 %v332, %v332
        %v335 = vmul.f32 %v333, %v325
        %v336 = vmul.f32 %v334, %v326
        %v337 = vsub.f32 0.0, %v335
        %v338 = vsub.f32 0.0, %v336
        %vm339 = vcmp.ne.s32.totalorder %v264, 256
        %v342 = vcombine.low %v337, %v338
        %v344 = vunpack.c.l.s4 1966171168
        %v345 = vunpack.c.0.s8 %v344
        %v346 = vlaneseq
        %v347 = vshrl.u32 %v346, 7
        %v348 = vsub.s32 %v345, %v347
        %v349 = vrot.slane %v342, %v348
        %v351 = vunpack.c.l.s4 1966171168
        %v352 = vunpack.c.0.s8 %v351
        %v353 = vlaneseq
        %v354 = vshrl.u32 %v353, 7
        %v355 = vsub.s32 %v352, %v354
        %v356 = vrot.slane %v349, %v355
        %v358 = vsel %vm339, %v356, 0.0
        %v359 = vsel %vm339, 1, 0
        %v360 = vcvt.s32.f32 %v359
        %v361 = vld [vmem:[%s247] sm:$0x1]
        %v363 = vrot.slane %v358, 1
        %v365 = vadd.f32 %v358, %v363
        %v366 = vadd.f32 %v361, %v365
        %367 = vst [vmem:[%s247] sm:$0x1] %v366
        %v368 = vld [vmem:[%s253] sm:$0x1]
        %v370 = vrot.slane %v360, 1
        %v372 = vadd.f32 %v360, %v370
        %v373 = vadd.f32 %v368, %v372
        %374 = vst [vmem:[%s253] sm:$0x1] %v373
        %s375 = sand.u32 %s103, 1
        %s376 = scalar_lea.sflag [#allocation4], %s375
        %s377 = sand.u32 %s103, 1
        %s378 = scalar_lea.vmem [#allocation7], %s377
        %s379 = sand.u32 %s129, 1
        %s380 = scalar_lea.sflag [#allocation9], %s379
        %s381 = sand.u32 %s129, 1
        %s382 = scalar_lea.vmem [#allocation8], %s381
        // Predicated region
        $region41: #{tpu_custom_call.1} parent=27 // pred_check
          %p383 = pneg %p113
        $region42: #{tpu_custom_call.1} parent=27 // pred_check_branch
          %385 = sbr.rel (%p383) target = $region44
        $region43: #{tpu_custom_call.1} parent=27 // pred_region
          %s387 = ssub.s32 16, 16
          %388 = vsyncadd %s376, %s387
          %s389 = smul.addr %s31, 16
          %s390 = scalar_lea.hbm %s2, %s389
          %s392 = sshll.u32 %s378, 4
          %s393 = int_to_ptr.vmem [resolvable:$true] %s392
          %395 = dma.vmem_to_hbm [thread:$0]  %s393, 16, %s390, %s376
        $region44: #{tpu_custom_call.1} parent=27 // pred_fallthru
          _
        // Predicated region
        $region45: #{tpu_custom_call.1} parent=27 // pred_check
          %p396 = pneg %p139
        $region46: #{tpu_custom_call.1} parent=27 // pred_check_branch
          %398 = sbr.rel (%p396) target = $region48
        $region47: #{tpu_custom_call.1} parent=27 // pred_region
          %s400 = ssub.s32 16, 16
          %401 = vsyncadd %s380, %s400
          %s402 = smul.addr %s31, 16
          %s403 = scalar_lea.hbm %s3, %s402
          %s405 = sshll.u32 %s382, 4
          %s406 = int_to_ptr.vmem [resolvable:$true] %s405
          %408 = dma.vmem_to_hbm [thread:$0]  %s406, 16, %s403, %s380
        $region48: #{tpu_custom_call.1} parent=27 // pred_fallthru
          _
      $region28: #{tpu_custom_call.1} parent=5 // pred_fallthru
        _
      %p409 = scmp.le.s32.totalorder 2, %s22
      // Predicated region
      $region49: #{tpu_custom_call.1} parent=5 // pred_check
        %p410 = pneg %p409
      $region50: #{tpu_custom_call.1} parent=5 // pred_check_branch
        %412 = sbr.rel (%p410) target = $region52
      $region51: #{tpu_custom_call.1} parent=5 // pred_region
        %s413 = ssub.s32 %s22, 2
        // Predicated region
        $region53: #{tpu_custom_call.1} parent=51 // pred_check
          %p414 = pneg %p119
        $region54: #{tpu_custom_call.1} parent=51 // pred_check_branch
          %416 = sbr.rel (%p414) target = $region56
        $region55: #{tpu_custom_call.1} parent=51 // pred_region
          %s417 = sand.u32 %s104, 1
          %s418 = scalar_lea.sflag [#allocation4], %s417
          %s419 = sand.u32 %s104, 1
          %s420 = scalar_lea.vmem [#allocation7], %s419
          %421 = dma.done %s418, 16
        $region56: #{tpu_custom_call.1} parent=51 // pred_fallthru
          _
        // Predicated region
        $region57: #{tpu_custom_call.1} parent=51 // pred_check
          %p422 = pneg %p145
        $region58: #{tpu_custom_call.1} parent=51 // pred_check_branch
          %424 = sbr.rel (%p422) target = $region60
        $region59: #{tpu_custom_call.1} parent=51 // pred_region
          %s425 = sand.u32 %s130, 1
          %s426 = scalar_lea.sflag [#allocation9], %s425
          %s427 = sand.u32 %s130, 1
          %s428 = scalar_lea.vmem [#allocation8], %s427
          %429 = dma.done %s426, 16
        $region60: #{tpu_custom_call.1} parent=51 // pred_fallthru
          _
      $region52: #{tpu_custom_call.1} parent=5 // pred_fallthru
        _
    $region6: #{tpu_custom_call.1} parent=1 // loop_footer
      %s26 = sadd.s32 1, %s22
    $region7: #{tpu_custom_call.1} parent=1 // loop_footer_branch
      %21 = sbr.rel target = $region3
    $region8: #{tpu_custom_call.1} parent=1 // loop_exit
      _
    %430 = vsyncpa [#allocation3], 1
    %s431 = scalar_lea.sflag [#allocation3], 1
    %432 = vsyncpa %s431, 1
    %433 = vsyncpa [#allocation6], 1
    %s434 = scalar_lea.sflag [#allocation6], 1
    %435 = vsyncpa %s434, 1
    %436 = vsyncpa [#allocation4], 1
    %s437 = scalar_lea.sflag [#allocation4], 1
    %438 = vsyncpa %s437, 1
    %439 = vsyncpa [#allocation9], 1
    %s440 = scalar_lea.sflag [#allocation9], 1
    %441 = vsyncpa %s440, 1

</llo_original>
